<compile_context>
chip_gen: v7x
topology: tpu7x:2x2x1
jax: 0.10.0
libtpu: 0.0.40
codegen_flags: <defaults>
</compile_context>

<pallas_src>
import jax
import jax.numpy as jnp
from jax.experimental import pallas as pl
from jax.experimental.pallas import tpu as pltpu

_MIB = 1024 * 1024


def attention_kernel(q_ref, k_ref, v_ref, w_ref, out_ref, attn_ref):
    # Per grid step:
    #   q_ref:   (tb, tq, H)
    #   k_ref:   (tb, Lk, H)
    #   v_ref:   (tb, Lk, H)
    #   w_ref:   (H, H+128)  columns [:H] = PyTorch W (out,in); column H = bias;
    #                        remaining 127 columns are zero lane padding.
    #   out_ref: (tb, tq, H)
    #   attn_ref:(tb, tq, Lk)
    tb, tq, H = q_ref.shape

    q = q_ref[...]
    k = k_ref[...]
    v = v_ref[...]
    w = w_ref[...]

    # Q-side restructure of  Q @ (K W^T + b)^T :
    #   scores[b,q,k] = sum_h (Q W)[b,q,h] * K[b,k,h] + (Q . b)[b,q]
    # The bias dot rides along as one extra MXU column of the projection matmul
    # (no VPU multiply / XLU reduce), and no transposes feed the MXU.
    qf = q.reshape(tb * tq, H)                                    # tq is 8-aligned
    qw_ext = jnp.dot(qf, w, preferred_element_type=jnp.float32)   # (tb*tq, H+128)
    qw = qw_ext[:, :H].reshape(tb, tq, H)
    qb = qw_ext[:, H:H + 1].reshape(tb, tq, 1)                    # Q . bias

    scores = jnp.einsum("bqi,bki->bqk", qw.astype(k.dtype), k,
                        preferred_element_type=jnp.float32) + qb  # (tb, tq, Lk)

    # TODO(synk): optional `mask` argument (masked_fill_ with -inf) is not wired
    # in; the reference forward with mask=None is reproduced exactly.

    # Softmax over the last axis (the module applies no 1/sqrt(d) scaling).
    m = jnp.max(scores, axis=-1, keepdims=True)
    e = jnp.exp(scores - m)
    s = jnp.sum(e, axis=-1, keepdims=True)
    inv = pl.reciprocal(s, approx=True)          # EUP slot (otherwise idle)
    inv = inv * (2.0 - s * inv)                  # one Newton step -> f32 accuracy
    attn = e * inv                               # (tb, tq, Lk) f32

    # attended_value = attn @ V (attn cast down to V's dtype, accumulate in f32).
    out = jnp.einsum("bqk,bkh->bqh", attn.astype(v.dtype), v,
                     preferred_element_type=jnp.float32)          # (tb, tq, H)

    attn_ref[...] = attn.astype(attn_ref.dtype)
    out_ref[...] = out.astype(out_ref.dtype)


def _tpu_info():
    """Best-effort (per-core VMEM bytes, MXU-friendly alignment, multi-TC flag)."""
    vmem_cap = None
    try:
        vmem_cap = int(pltpu.get_tpu_info().vmem_capacity_bytes)
    except Exception:
        vmem_cap = None
    kind = ""
    try:
        kind = jax.devices()[0].device_kind.lower()
    except Exception:
        pass
    is_v7 = ("v7" in kind) or ("7x" in kind)
    is_v6 = "v6" in kind
    is_v5 = "v5" in kind
    if vmem_cap is None:
        # v7x: 64 MiB per TensorCore; v5e/v6e: 128 MiB; unknown: be conservative.
        vmem_cap = 64 * _MIB if is_v7 else (128 * _MIB if (is_v5 or is_v6) else 64 * _MIB)
    if is_v7:
        vmem_cap = min(vmem_cap, 64 * _MIB)
    mxu_align = 128 if is_v5 else 256          # v6e/v7x MXUs are 2x 256x256
    multi_tc = is_v7 or not (is_v5 or is_v6)   # v7x has 2 TCs/chip; unknown -> assume 2
    return vmem_cap, mxu_align, multi_tc


def _choose_block_q(Lq, Lk, H, in_itemsize, attn_itemsize, usable_vmem, align):
    """Largest 8-aligned q-tile whose real per-step working set fits `usable_vmem`."""
    lq8 = max(8, ((Lq + 7) // 8) * 8)
    # block_q-independent per-step VMEM: double-buffered K and V blocks plus the
    # (conservatively double-counted) augmented weight block.
    fixed = 2 * 2 * Lk * H * in_itemsize + 2 * H * (H + 128) * in_itemsize
    avail = max(usable_vmem - fixed, _MIB)
    # TODO(synk): add a kv-tiled (online-softmax) path when the full (Lk, H) K/V
    # blocks alone do not fit VMEM; for now block_q simply shrinks to its floor.
    # Per query-row cost: Q and out blocks (x2 buffers each), attn block (x2),
    # ~3 f32 (tq, Lk) in-kernel intermediates (scores/exp/attn) and f32 qw_ext.
    per_row = (2 * H * in_itemsize + 2 * H * in_itemsize
               + 2 * Lk * attn_itemsize + 3 * Lk * 4 + (H + 128) * 4)
    tq = int(avail // max(per_row, 1))
    tq = max(8, min(tq, 1024, lq8))
    # Prefer MXU-filling multiples (256 on v6e/v7x, 128 on v5e); no hard 128 floor
    # so very large Lk shrinks the tile instead of spilling.
    for a in (align, 128, 8):
        if tq >= a:
            tq = (tq // a) * a
            break
    # Rebalance so Lq padding stays small (keeps the step count, trims the tile).
    nblocks = (lq8 + tq - 1) // tq
    tq = (((lq8 + nblocks - 1) // nblocks) + 7) // 8 * 8
    return max(8, min(tq, lq8))


def attention(query, key, value, w, b, *, block_b=None, block_q=None,
              vmem_limit_bytes=None, interpret=False):
    """query: (B, Lq, H), key/value: (B, Lk, H), w: (H, H) PyTorch (out,in), b: (H,)."""
    B, Lq, H = query.shape
    _, Lk, _ = key.shape

    vmem_cap, mxu_align, multi_tc = _tpu_info()
    if vmem_limit_bytes is None:
        # ~15% headroom under the physical per-core VMEM (54 MiB on v7x,
        # ~108 MiB on v5e/v6e) instead of pinning the limit at v7x's capacity.
        vmem_limit_bytes = int(vmem_cap * 0.85)
    usable = int(vmem_limit_bytes * 0.8)       # headroom for compiler scratch

    in_itemsize = jnp.dtype(query.dtype).itemsize
    attn_dtype = query.dtype                   # softmax preserves input dtype (PyTorch)
    attn_itemsize = jnp.dtype(attn_dtype).itemsize

    if block_q is None:
        block_q = _choose_block_q(Lq, Lk, H, in_itemsize, attn_itemsize,
                                  usable, mxu_align)
    else:
        block_q = max(8, ((int(block_q) + 7) // 8) * 8)

    Lq_pad = ((Lq + block_q - 1) // block_q) * block_q

    if block_b is None:
        # Tiny-shape regime: fold batch into few grid steps so per-step overhead
        # and MXU underfill stop dominating, but keep >= 2 grid steps on
        # multi-TensorCore parts (v7x) so the second core gets work.
        total_bytes = (B * Lq + 2 * B * Lk) * H * in_itemsize + B * Lq * Lk * 4
        tiny = total_bytes <= (8 * _MIB)
        if tiny:
            q_steps = Lq_pad // block_q
            if multi_tc and q_steps < 2 and B > 1:
                block_b = max(d for d in range(1, B // 2 + 1) if B % d == 0)
            else:
                block_b = B
        else:
            block_b = 1
    if B % block_b != 0:
        block_b = 1                            # robust fallback, never assert

    if Lq_pad != Lq:
        query = jnp.pad(query, ((0, 0), (0, Lq_pad - Lq), (0, 0)))

    # Fold the Linear bias into the projection matmul as one extra column,
    # padded to a full 128-lane block: qw_ext = Q @ [W | b | 0].
    w_aug = jnp.concatenate(
        [w, b.reshape(H, 1).astype(w.dtype),
         jnp.zeros((H, 127), dtype=w.dtype)], axis=1)              # (H, H+128)

    grid = (B // block_b, Lq_pad // block_q)

    # NOTE: when H or Lk are < 128 (as in the demo) trailing output dims fall back
    # to masked vst.msk stores; production shapes should keep H, Lk >= 128.
    out_shape = (
        jax.ShapeDtypeStruct((B, Lq_pad, H), query.dtype),    # attended_value
        jax.ShapeDtypeStruct((B, Lq_pad, Lk), attn_dtype),    # attention_weights
    )

    # Single-buffer the constant-index weight block (pure VMEM saving); fall back
    # silently on jax versions without BlockSpec.pipeline_mode.
    try:
        w_spec = pl.BlockSpec((H, H + 128), lambda bi, qi: (0, 0),
                              pipeline_mode=pl.Buffered(1))
    except TypeError:
        w_spec = pl.BlockSpec((H, H + 128), lambda bi, qi: (0, 0))

    grid_spec = pltpu.PrefetchScalarGridSpec(
        num_scalar_prefetch=0,
        grid=grid,
        in_specs=[
            pl.BlockSpec((block_b, block_q, H), lambda bi, qi: (bi, qi, 0)),  # Q
            pl.BlockSpec((block_b, Lk, H), lambda bi, qi: (bi, 0, 0)),        # K
            pl.BlockSpec((block_b, Lk, H), lambda bi, qi: (bi, 0, 0)),        # V
            w_spec,                                                           # [W | b]
        ],
        out_specs=[
            pl.BlockSpec((block_b, block_q, H), lambda bi, qi: (bi, qi, 0)),
            pl.BlockSpec((block_b, block_q, Lk), lambda bi, qi: (bi, qi, 0)),
        ],
    )

    out, attn = pl.pallas_call(
        attention_kernel,
        out_shape=out_shape,
        grid_spec=grid_spec,
        compiler_params=pltpu.CompilerParams(
            dimension_semantics=("parallel", "parallel"),
            vmem_limit_bytes=int(vmem_limit_bytes)),
        interpret=interpret,
    )(query, key, value, w_aug)

    if Lq_pad != Lq:
        out = out[:, :Lq]
        attn = attn[:, :Lq]
    return out, attn


def attention_ref(query, key, value, w, b):
    """Pure-JAX reference of the PyTorch forward (mask=None path)."""
    kw = jnp.einsum("bkh,oh->bko", key, w) + b
    scores = jnp.einsum("bqo,bko->bqk", query, kw)
    attn = jax.nn.softmax(scores, axis=-1)
    out = jnp.einsum("bqk,bkh->bqh", attn, value)
    return out, attn


if __name__ == "__main__":
    B, Lq, Lk, H = 2, 8, 8, 32
    key0 = jax.random.PRNGKey(0)
    k_q, k_k, k_v, k_w, k_b = jax.random.split(key0, 5)

    query = jax.random.normal(k_q, (B, Lq, H), dtype=jnp.float32)
    keyt = jax.random.normal(k_k, (B, Lk, H), dtype=jnp.float32)
    value = jax.random.normal(k_v, (B, Lk, H), dtype=jnp.float32)

    # Deterministic Linear params (PyTorch layout: weight (out, in), bias (out,))
    bound = 1.0 / (H ** 0.5)
    w = jax.random.uniform(k_w, (H, H), minval=-bound, maxval=bound,
                           dtype=jnp.float32)
    bias = jax.random.uniform(k_b, (H,), minval=-bound, maxval=bound,
                              dtype=jnp.float32)

    out, attn = attention(query, keyt, value, w, bias)
    out = jax.block_until_ready(out)
    attn = jax.block_until_ready(attn)

    out_r, attn_r = attention_ref(query, keyt, value, w, bias)
    assert jnp.allclose(out, out_r, atol=1e-4, rtol=1e-4), "attended_value mismatch"
    assert jnp.allclose(attn, attn_r, atol=1e-4, rtol=1e-4), "attention_weights mismatch"

    print("KERNEL_OK")
</pallas_src>

<mosaic_0001>
module attributes {stable_mosaic.version = 11 : i64} {
  func.func @attention_kernel(%arg0: i32, %arg1: i32, %arg2: memref<1x8x32xf32, #tpu.memory_space<vmem>>, %arg3: memref<1x8x32xf32, #tpu.memory_space<vmem>>, %arg4: memref<1x8x32xf32, #tpu.memory_space<vmem>>, %arg5: memref<32x160xf32, #tpu.memory_space<vmem>>, %arg6: memref<1x8x32xf32, #tpu.memory_space<vmem>>, %arg7: memref<1x8x8xf32, #tpu.memory_space<vmem>>) attributes {dimension_semantics = [#tpu.dimension_semantics<parallel>, #tpu.dimension_semantics<parallel>], iteration_bounds = array<i64: 2, 1>, scalar_prefetch = 0 : i64, scratch_operands = 0 : i64, tpu.core_type = #tpu.core_type<tc>, window_params = [{transform_indices = @transform_0, window_bounds = array<i64: 1, 8, 32>}, {transform_indices = @transform_1, window_bounds = array<i64: 1, 8, 32>}, {transform_indices = @transform_2, window_bounds = array<i64: 1, 8, 32>}, {pipeline_mode = #tpu.pipeline_mode<synchronous>, transform_indices = @transform_3, window_bounds = array<i64: 32, 160>}, {transform_indices = @transform_4, window_bounds = array<i64: 1, 8, 32>}, {transform_indices = @transform_5, window_bounds = array<i64: 1, 8, 8>}]} {
    %c0 = arith.constant 0 : index
    %c0_0 = arith.constant 0 : index
    %c0_1 = arith.constant 0 : index
    %0 = vector.load %arg2[%c0, %c0_0, %c0_1] : memref<1x8x32xf32, #tpu.memory_space<vmem>>, vector<1x8x32xf32>
    %c0_2 = arith.constant 0 : index
    %c0_3 = arith.constant 0 : index
    %c0_4 = arith.constant 0 : index
    %1 = vector.load %arg3[%c0_2, %c0_3, %c0_4] : memref<1x8x32xf32, #tpu.memory_space<vmem>>, vector<1x8x32xf32>
    %c0_5 = arith.constant 0 : index
    %c0_6 = arith.constant 0 : index
    %c0_7 = arith.constant 0 : index
    %2 = vector.load %arg4[%c0_5, %c0_6, %c0_7] : memref<1x8x32xf32, #tpu.memory_space<vmem>>, vector<1x8x32xf32>
    %c0_8 = arith.constant 0 : index
    %c0_9 = arith.constant 0 : index
    %3 = vector.load %arg5[%c0_8, %c0_9] : memref<32x160xf32, #tpu.memory_space<vmem>>, vector<32x160xf32>
    %4 = vector.shape_cast %0 : vector<1x8x32xf32> to vector<8x32xf32>
    %cst = arith.constant dense<0.000000e+00> : vector<8x160xf32>
    %5 = tpu.matmul %4, %3, %cst {dimension_numbers = #tpu.dot_dimension_numbers<[1], [0], [0], [1], [0, 0, 1, 1], [], []>} : vector<8x32xf32>, vector<32x160xf32>, vector<8x160xf32> -> vector<8x160xf32>
    %6 = vector.extract_strided_slice %5 {offsets = [0, 0], sizes = [8, 32], strides = [1, 1]} : vector<8x160xf32> to vector<8x32xf32>
    %7 = vector.shape_cast %6 : vector<8x32xf32> to vector<1x8x32xf32>
    %8 = vector.extract_strided_slice %5 {offsets = [0, 32], sizes = [8, 1], strides = [1, 1]} : vector<8x160xf32> to vector<8x1xf32>
    %9 = vector.shape_cast %8 : vector<8x1xf32> to vector<1x8x1xf32>
    "tpu.trace_start"() <{level = 10 : i32, message = "bqi,bki->bqk"}> : () -> ()
    %cst_10 = arith.constant dense<0.000000e+00> : vector<1x8x8xf32>
    %10 = tpu.matmul %7, %1, %cst_10 {dimension_numbers = #tpu.dot_dimension_numbers<[2], [2], [1], [1], [0, 0, 0, 1, 1, 1], [0], [0]>} : vector<1x8x32xf32>, vector<1x8x32xf32>, vector<1x8x8xf32> -> vector<1x8x8xf32>
    "tpu.trace_stop"() : () -> ()
    %11 = vector.broadcast %9 : vector<1x8x1xf32> to vector<1x8x8xf32>
    %12 = arith.addf %10, %11 : vector<1x8x8xf32>
    %cst_11 = arith.constant dense<0xFF800000> : vector<1x8xf32>
    %13 = vector.multi_reduction <maximumf>, %12, %cst_11 [2] : vector<1x8x8xf32> to vector<1x8xf32>
    %14 = vector.shape_cast %13 : vector<1x8xf32> to vector<1x8x1xf32>
    %15 = vector.broadcast %14 : vector<1x8x1xf32> to vector<1x8x8xf32>
    %16 = arith.subf %12, %15 : vector<1x8x8xf32>
    %17 = math.exp %16 : vector<1x8x8xf32>
    %cst_12 = arith.constant dense<0.000000e+00> : vector<1x8xf32>
    %18 = vector.multi_reduction <add>, %17, %cst_12 [2] : vector<1x8x8xf32> to vector<1x8xf32>
    %19 = vector.shape_cast %18 : vector<1x8xf32> to vector<1x8x1xf32>
    %20 = tpu.reciprocal %19 {approx = true} : vector<1x8x1xf32> -> vector<1x8x1xf32>
    %21 = arith.mulf %19, %20 : vector<1x8x1xf32>
    %cst_13 = arith.constant 2.000000e+00 : f32
    %22 = vector.broadcast %cst_13 : f32 to vector<1x8x1xf32>
    %23 = arith.subf %22, %21 : vector<1x8x1xf32>
    %24 = arith.mulf %20, %23 : vector<1x8x1xf32>
    %25 = vector.broadcast %24 : vector<1x8x1xf32> to vector<1x8x8xf32>
    %26 = arith.mulf %17, %25 : vector<1x8x8xf32>
    "tpu.trace_start"() <{level = 10 : i32, message = "bqk,bkh->bqh"}> : () -> ()
    %cst_14 = arith.constant dense<0.000000e+00> : vector<1x8x32xf32>
    %27 = tpu.matmul %26, %2, %cst_14 {dimension_numbers = #tpu.dot_dimension_numbers<[2], [1], [1], [2], [0, 0, 0, 1, 1, 2], [0], [0]>} : vector<1x8x8xf32>, vector<1x8x32xf32>, vector<1x8x32xf32> -> vector<1x8x32xf32>
    "tpu.trace_stop"() : () -> ()
    %c0_15 = arith.constant 0 : index
    %c0_16 = arith.constant 0 : index
    %c0_17 = arith.constant 0 : index
    %28 = vector.load %arg7[%c0_15, %c0_16, %c0_17] : memref<1x8x8xf32, #tpu.memory_space<vmem>>, vector<1x8x8xf32>
    tpu.vector_store %arg7[%c0_15, %c0_16, %c0_17], %26 {strides = array<i32>} : memref<1x8x8xf32, #tpu.memory_space<vmem>>, vector<1x8x8xf32>,
    %c0_18 = arith.constant 0 : index
    %c0_19 = arith.constant 0 : index
    %c0_20 = arith.constant 0 : index
    %29 = vector.load %arg6[%c0_18, %c0_19, %c0_20] : memref<1x8x32xf32, #tpu.memory_space<vmem>>, vector<1x8x32xf32>
    tpu.vector_store %arg6[%c0_18, %c0_19, %c0_20], %27 {strides = array<i32>} : memref<1x8x32xf32, #tpu.memory_space<vmem>>, vector<1x8x32xf32>,
    return
  }
  func.func @transform_0(%arg0: i32, %arg1: i32) -> (i32, i32, i32) {
    %c0_i32 = arith.constant 0 : i32
    %c0_i32_0 = arith.constant 0 : i32
    return %arg0, %arg1, %c0_i32 : i32, i32, i32
  }
  func.func @transform_1(%arg0: i32, %arg1: i32) -> (i32, i32, i32) {
    %c0_i32 = arith.constant 0 : i32
    %c0_i32_0 = arith.constant 0 : i32
    %c0_i32_1 = arith.constant 0 : i32
    return %arg0, %c0_i32, %c0_i32_0 : i32, i32, i32
  }
  func.func @transform_2(%arg0: i32, %arg1: i32) -> (i32, i32, i32) {
    %c0_i32 = arith.constant 0 : i32
    %c0_i32_0 = arith.constant 0 : i32
    %c0_i32_1 = arith.constant 0 : i32
    return %arg0, %c0_i32, %c0_i32_0 : i32, i32, i32
  }
  func.func @transform_3(%arg0: i32, %arg1: i32) -> (i32, i32) {
    %c0_i32 = arith.constant 0 : i32
    %c0_i32_0 = arith.constant 0 : i32
    %c0_i32_1 = arith.constant 0 : i32
    return %c0_i32, %c0_i32_0 : i32, i32
  }
  func.func @transform_4(%arg0: i32, %arg1: i32) -> (i32, i32, i32) {
    %c0_i32 = arith.constant 0 : i32
    %c0_i32_0 = arith.constant 0 : i32
    return %arg0, %arg1, %c0_i32 : i32, i32, i32
  }
  func.func @transform_5(%arg0: i32, %arg1: i32) -> (i32, i32, i32) {
    %c0_i32 = arith.constant 0 : i32
    %c0_i32_0 = arith.constant 0 : i32
    return %arg0, %arg1, %c0_i32 : i32, i32, i32
  }
}

</mosaic_0001>

<llo_original>
// kernel: tpu_custom_call.1
$region0: #{tpu_custom_call.1}
  #allocation0 [shape = 'u32[]', space=smem, size = 0x4, offset = 0x4, fixed_abs, tag = 'smem constant byte address 0x4 - core index']
  #allocation1 [shape = 'u32[144,128]{1,0:T(1,128)}', space=vmem, size = 0x12000, scoped, tag = 'internal scratch']
  %s0 = inlined_call_operand.hbm [shape: f32[2,8,32], index: 0, kind: input, shape index: {}]
  %s1 = inlined_call_operand.hbm [shape: f32[2,8,32], index: 1, kind: input, shape index: {}]
  %s2 = inlined_call_operand.hbm [shape: f32[2,8,32], index: 2, kind: input, shape index: {}]
  %s3 = inlined_call_operand.hbm [shape: f32[32,160], index: 3, kind: input, shape index: {}]
  %s4 = inlined_call_operand.hbm [shape: f32[2,8,32], index: 4, kind: output, shape index: {0}]
  %s5 = inlined_call_operand.hbm [shape: f32[2,8,8], index: 5, kind: output, shape index: {1}]
  %6 = xla_tuple %s4, %s5
  %s7 = sld [smem:[#allocation0]]
  $region73: #{tpu_custom_call.1} parent=0
    _
  %s9 = ssub.s32 1, %s7
  %s10 = scalar_select 0, %s9, %s7
  $region1: #{tpu_custom_call.1} parent=0
    #allocation2 [shape = 'u8[8192]{0}', space=vmem, size = 0x2000, scoped, tag = 'input window, operand 0']
    #allocation3 [shape = 's32[2]{0}', space=sflag, size = 0x8, scoped, tag = 'scoped memory for tpu_custom_call.1']
    #allocation4 [shape = 's32[2]{0}', space=sflag, size = 0x8, scoped, tag = 'scoped memory for tpu_custom_call.1']
    #allocation5 [shape = 'u8[8192]{0}', space=vmem, size = 0x2000, scoped, tag = 'input window, operand 1']
    #allocation6 [shape = 's32[2]{0}', space=sflag, size = 0x8, scoped, tag = 'scoped memory for tpu_custom_call.1']
    #allocation7 [shape = 'u8[8192]{0}', space=vmem, size = 0x2000, scoped, tag = 'input window, operand 2']
    #allocation8 [shape = 'u8[32768]{0}', space=vmem, size = 0x8000, scoped, tag = 'input window, operand 3, single buffered']
    #allocation9 [shape = 's32[1]{0}', space=sflag, size = 0x4, scoped, tag = 'scoped memory for tpu_custom_call.1']
    #allocation10 [shape = 'u8[8192]{0}', space=vmem, size = 0x2000, scoped, tag = 'output window, operand 0']
    #allocation11 [shape = 'u8[8192]{0}', space=vmem, size = 0x2000, scoped, tag = 'output window, operand 1']
    #allocation12 [shape = 's32[2]{0}', space=sflag, size = 0x8, scoped, tag = 'scoped memory for tpu_custom_call.1']
    %11 = vsyncpa [#allocation3], 0
    %s12 = scalar_lea.sflag [#allocation3], 1
    %13 = vsyncpa %s12, 0
    %14 = vsyncpa [#allocation6], 0
    %s15 = scalar_lea.sflag [#allocation6], 1
    %16 = vsyncpa %s15, 0
    %17 = vsyncpa [#allocation9], 0
    %18 = vsyncpa [#allocation4], 0
    %s19 = scalar_lea.sflag [#allocation4], 1
    %20 = vsyncpa %s19, 0
    %21 = vsyncpa [#allocation12], 0
    %s22 = scalar_lea.sflag [#allocation12], 1
    %23 = vsyncpa %s22, 0
    loop: start=0, step=1, limit=4
    $region2: #{tpu_custom_call.1} parent=1 // loop_pre_header
      _
    $region3: #{tpu_custom_call.1} parent=1 // loop_header
      %s25 = sphi 0, %s29
      %p26 = scmp.ge.s32.totalorder %s25, 4
      %s32 = sphi 0, %s44
      %s33 = sphi 0, %s40
      %s34 = sphi 0, %s32
      %s35 = sphi 0, %s33
      %s36 = sphi 0, %s34
      %s37 = sphi 0, %s35
      %s49 = sphi 0, %s51
      %s52 = sphi 0, %s49
      %s53 = sphi 0, %s52
      %s69 = sphi 0, %s53
      %s75 = sphi 0, %s77
      %s78 = sphi 0, %s75
      %s79 = sphi 0, %s78
      %s95 = sphi 0, %s79
      %s101 = sphi 0, %s103
      %s104 = sphi 0, %s101
      %s105 = sphi 0, %s104
      %s121 = sphi 0, %s105
      %s125 = sphi 0, %s125
      %s127 = sphi 0, %s125
      %s128 = sphi 0, %s127
      %s142 = sphi 0, %s128
      %s150 = sphi 0, %s152
      %s153 = sphi 0, %s150
      %s154 = sphi 0, %s153
      %s170 = sphi 0, %s154
      %s178 = sphi 0, %s180
      %s181 = sphi 0, %s178
      %s182 = sphi 0, %s181
      %s198 = sphi 0, %s182
    $region4: #{tpu_custom_call.1} parent=1 // loop_header_branch
      %28 = sbr.rel (%p26) target = $region8
    $region5: #{tpu_custom_call.1} parent=1 // loop_body
      %s30 = ssub.s32 %s25, 1
      %s31 = ssub.s32 %s25, 2
      %s38 = sadd.s32 1, %s33
      %p39 = scmp.ge.s32.totalorder %s38, 1
      %s40 = scalar_select %p39, 0, %s38
      %s41 = sadd.s32 1, %s32
      %s42 = scalar_select %p39, %s41, %s32
      %p43 = scmp.ge.s32.totalorder %s42, 2
      %s44 = scalar_select %p43, 0, %s42
      %s45 = ssub.s32 %s32, %s44
      %s46 = ssub.s32 %s33, %s40
      %s47 = sor.u32 %s45, %s46
      %p48 = scmp.eq.s32.totalorder %s47, 0
      %s50 = sadd.s32 %s49, 1
      %s51 = scalar_select %p48, %s49, %s50
      %p54 = pneg %p48
      %p55 = scmp.eq.s32.totalorder %s25, 1
      %p56 = por %p54, %p55
      %p57 = scmp.ne.s32.totalorder %s49, %s52
      %p58 = scmp.eq.s32.totalorder %s25, 0
      %p59 = por %p57, %p58
      %p60 = scmp.ne.s32.totalorder %s49, %s52
      %p61 = scmp.eq.s32.totalorder %s30, 1
      %p62 = por %p60, %p61
      %p63 = scmp.ne.s32.totalorder %s52, %s53
      %p64 = scmp.eq.s32.totalorder %s30, 0
      %p65 = por %p63, %p64
      %p66 = scmp.ne.s32.totalorder %s52, %s53
      %p67 = scmp.eq.s32.totalorder %s31, 1
      %p68 = por %p66, %p67
      %p70 = scmp.ne.s32.totalorder %s53, %s69
      %p71 = scmp.eq.s32.totalorder %s31, 0
      %p72 = por %p70, %p71
      %s73 = ssub.s32 %s32, %s44
      %p74 = scmp.eq.s32.totalorder %s73, 0
      %s76 = sadd.s32 %s75, 1
      %s77 = scalar_select %p74, %s75, %s76
      %p80 = pneg %p74
      %p81 = scmp.eq.s32.totalorder %s25, 1
      %p82 = por %p80, %p81
      %p83 = scmp.ne.s32.totalorder %s75, %s78
      %p84 = scmp.eq.s32.totalorder %s25, 0
      %p85 = por %p83, %p84
      %p86 = scmp.ne.s32.totalorder %s75, %s78
      %p87 = scmp.eq.s32.totalorder %s30, 1
      %p88 = por %p86, %p87
      %p89 = scmp.ne.s32.totalorder %s78, %s79
      %p90 = scmp.eq.s32.totalorder %s30, 0
      %p91 = por %p89, %p90
      %p92 = scmp.ne.s32.totalorder %s78, %s79
      %p93 = scmp.eq.s32.totalorder %s31, 1
      %p94 = por %p92, %p93
      %p96 = scmp.ne.s32.totalorder %s79, %s95
      %p97 = scmp.eq.s32.totalorder %s31, 0
      %p98 = por %p96, %p97
      %s99 = ssub.s32 %s32, %s44
      %p100 = scmp.eq.s32.totalorder %s99, 0
      %s102 = sadd.s32 %s101, 1
      %s103 = scalar_select %p100, %s101, %s102
      %p106 = pneg %p100
      %p107 = scmp.eq.s32.totalorder %s25, 1
      %p108 = por %p106, %p107
      %p109 = scmp.ne.s32.totalorder %s101, %s104
      %p110 = scmp.eq.s32.totalorder %s25, 0
      %p111 = por %p109, %p110
      %p112 = scmp.ne.s32.totalorder %s101, %s104
      %p113 = scmp.eq.s32.totalorder %s30, 1
      %p114 = por %p112, %p113
      %p115 = scmp.ne.s32.totalorder %s104, %s105
      %p116 = scmp.eq.s32.totalorder %s30, 0
      %p117 = por %p115, %p116
      %p118 = scmp.ne.s32.totalorder %s104, %s105
      %p119 = scmp.eq.s32.totalorder %s31, 1
      %p120 = por %p118, %p119
      %p122 = scmp.ne.s32.totalorder %s105, %s121
      %p123 = scmp.eq.s32.totalorder %s31, 0
      %p124 = por %p122, %p123
      %s126 = sadd.s32 %s125, 1
      %p129 = scmp.eq.s32.totalorder %s25, 1
      %p130 = scmp.ne.s32.totalorder %s125, %s127
      %p131 = scmp.eq.s32.totalorder %s25, 0
      %p132 = por %p130, %p131
      %p133 = scmp.ne.s32.totalorder %s125, %s127
      %p134 = scmp.eq.s32.totalorder %s30, 1
      %p135 = por %p133, %p134
      %p136 = scmp.ne.s32.totalorder %s127, %s128
      %p137 = scmp.eq.s32.totalorder %s30, 0
      %p138 = por %p136, %p137
      %p139 = scmp.ne.s32.totalorder %s127, %s128
      %p140 = scmp.eq.s32.totalorder %s31, 1
      %p141 = por %p139, %p140
      %p143 = scmp.ne.s32.totalorder %s128, %s142
      %p144 = scmp.eq.s32.totalorder %s31, 0
      %p145 = por %p143, %p144
      %s146 = ssub.s32 %s32, %s44
      %s147 = ssub.s32 %s33, %s40
      %s148 = sor.u32 %s146, %s147
      %p149 = scmp.eq.s32.totalorder %s148, 0
      %s151 = sadd.s32 %s150, 1
      %s152 = scalar_select %p149, %s150, %s151
      %p155 = pneg %p149
      %p156 = scmp.eq.s32.totalorder %s25, 1
      %p157 = por %p155, %p156
      %p158 = scmp.ne.s32.totalorder %s150, %s153
      %p159 = scmp.eq.s32.totalorder %s25, 0
      %p160 = por %p158, %p159
      %p161 = scmp.ne.s32.totalorder %s150, %s153
      %p162 = scmp.eq.s32.totalorder %s30, 1
      %p163 = por %p161, %p162
      %p164 = scmp.ne.s32.totalorder %s153, %s154
      %p165 = scmp.eq.s32.totalorder %s30, 0
      %p166 = por %p164, %p165
      %p167 = scmp.ne.s32.totalorder %s153, %s154
      %p168 = scmp.eq.s32.totalorder %s31, 1
      %p169 = por %p167, %p168
      %p171 = scmp.ne.s32.totalorder %s154, %s170
      %p172 = scmp.eq.s32.totalorder %s31, 0
      %p173 = por %p171, %p172
      %s174 = ssub.s32 %s32, %s44
      %s175 = ssub.s32 %s33, %s40
      %s176 = sor.u32 %s174, %s175
      %p177 = scmp.eq.s32.totalorder %s176, 0
      %s179 = sadd.s32 %s178, 1
      %s180 = scalar_select %p177, %s178, %s179
      %p183 = pneg %p177
      %p184 = scmp.eq.s32.totalorder %s25, 1
      %p185 = por %p183, %p184
      %p186 = scmp.ne.s32.totalorder %s178, %s181
      %p187 = scmp.eq.s32.totalorder %s25, 0
      %p188 = por %p186, %p187
      %p189 = scmp.ne.s32.totalorder %s178, %s181
      %p190 = scmp.eq.s32.totalorder %s30, 1
      %p191 = por %p189, %p190
      %p192 = scmp.ne.s32.totalorder %s181, %s182
      %p193 = scmp.eq.s32.totalorder %s30, 0
      %p194 = por %p192, %p193
      %p195 = scmp.ne.s32.totalorder %s181, %s182
      %p196 = scmp.eq.s32.totalorder %s31, 1
      %p197 = por %p195, %p196
      %p199 = scmp.ne.s32.totalorder %s182, %s198
      %p200 = scmp.eq.s32.totalorder %s31, 0
      %p201 = por %p199, %p200
      %p202 = scmp.le.s32.totalorder 1, %s25
      %p203 = scmp.lt.s32.totalorder %s25, 3
      %p204 = pnand %p202, %p203
      %p205 = pneg %p204
      // Predicated region
      $region9: #{tpu_custom_call.1} parent=5 // pred_check
        _
      $region10: #{tpu_custom_call.1} parent=5 // pred_check_branch
        %207 = sbr.rel (%p204) target = $region12
      $region11: #{tpu_custom_call.1} parent=5 // pred_region
        %s208 = ssub.s32 %s25, 1
        // Predicated region
        $region13: #{tpu_custom_call.1} parent=11 // pred_check
          %p209 = pneg %p138
        $region14: #{tpu_custom_call.1} parent=11 // pred_check_branch
          %211 = sbr.rel (%p209) target = $region16
        $region15: #{tpu_custom_call.1} parent=11 // pred_region
          %s213 = ssub.s32 1024, 1024
          %214 = vsyncadd [#allocation9], %s213
          %s215 = sshll.u32 [#allocation8], 4
          %s216 = int_to_ptr.vmem [resolvable:$true] %s215
          %221 = dma.hbm_to_vmem [thread:$0]  %s3, 1024, %s216, [#allocation9], 256, 256, 16
        $region16: #{tpu_custom_call.1} parent=11 // pred_fallthru
          _
      $region12: #{tpu_custom_call.1} parent=5 // pred_fallthru
        _
      %p222 = scmp.lt.s32.totalorder %s25, 2
      // Predicated region
      $region17: #{tpu_custom_call.1} parent=5 // pred_check
        %p223 = pneg %p222
      $region18: #{tpu_custom_call.1} parent=5 // pred_check_branch
        %225 = sbr.rel (%p223) target = $region20
      $region19: #{tpu_custom_call.1} parent=5 // pred_region
        // Predicated region
        $region21: #{tpu_custom_call.1} parent=19 // pred_check
          %p226 = pneg %p59
        $region22: #{tpu_custom_call.1} parent=19 // pred_check_branch
          %228 = sbr.rel (%p226) target = $region24
        $region23: #{tpu_custom_call.1} parent=19 // pred_region
          %s229 = sand.u32 %s49, 1
          %s230 = scalar_lea.sflag [#allocation3], %s229
          %s231 = sand.u32 %s49, 1
          %s232 = smul.addr %s231, 8
          %s233 = scalar_lea.vmem [#allocation2], %s232
          %s235 = ssub.s32 128, 128
          %236 = vsyncadd %s230, %s235
          %s237 = sadd.s32 %s33, %s32
          %s238 = smul.addr %s237, 128
          %s239 = scalar_lea.hbm %s0, %s238
          %s241 = sshll.u32 %s233, 4
          %s242 = int_to_ptr.vmem [resolvable:$true] %s241
          %244 = dma.hbm_to_vmem [thread:$0]  %s239, 128, %s242, %s230
        $region24: #{tpu_custom_call.1} parent=19 // pred_fallthru
          _
        // Predicated region
        $region25: #{tpu_custom_call.1} parent=19 // pred_check
          %p245 = pneg %p85
        $region26: #{tpu_custom_call.1} parent=19 // pred_check_branch
          %247 = sbr.rel (%p245) target = $region28
        $region27: #{tpu_custom_call.1} parent=19 // pred_region
          %s248 = sand.u32 %s25, 1
          %s249 = scalar_lea.sflag [#allocation6], %s248
          %s250 = sand.u32 %s75, 1
          %s251 = smul.addr %s250, 8
          %s252 = scalar_lea.vmem [#allocation5], %s251
          %s254 = ssub.s32 128, 128
          %255 = vsyncadd %s249, %s254
          %s256 = smul.addr %s32, 128
          %s257 = scalar_lea.hbm %s1, %s256
          %s259 = sshll.u32 %s252, 4
          %s260 = int_to_ptr.vmem [resolvable:$true] %s259
          %262 = dma.hbm_to_vmem [thread:$0]  %s257, 128, %s260, %s249
        $region28: #{tpu_custom_call.1} parent=19 // pred_fallthru
          _
        // Predicated region
        $region29: #{tpu_custom_call.1} parent=19 // pred_check
          %p263 = pneg %p111
        $region30: #{tpu_custom_call.1} parent=19 // pred_check_branch
          %265 = sbr.rel (%p263) target = $region32
        $region31: #{tpu_custom_call.1} parent=19 // pred_region
          %s266 = sand.u32 %s25, 1
          %s267 = scalar_lea.sflag [#allocation6], %s266
          %s268 = sand.u32 %s101, 1
          %s269 = smul.addr %s268, 8
          %s270 = scalar_lea.vmem [#allocation7], %s269
          %s272 = ssub.s32 128, 128
          %273 = vsyncadd %s267, %s272
          %s274 = smul.addr %s32, 128
          %s275 = scalar_lea.hbm %s2, %s274
          %s277 = sshll.u32 %s270, 4
          %s278 = int_to_ptr.vmem [resolvable:$true] %s277
          %280 = dma.hbm_to_vmem [thread:$0]  %s275, 128, %s278, %s267
        $region32: #{tpu_custom_call.1} parent=19 // pred_fallthru
          _
      $region20: #{tpu_custom_call.1} parent=5 // pred_fallthru
        _
      %p281 = scmp.le.s32.totalorder 1, %s25
      %p282 = scmp.lt.s32.totalorder %s25, 3
      %p283 = pnand %p281, %p282
      %p284 = pneg %p283
      // Predicated region
      $region33: #{tpu_custom_call.1} parent=5 // pred_check
        _
      $region34: #{tpu_custom_call.1} parent=5 // pred_check_branch
        %286 = sbr.rel (%p283) target = $region36
      $region35: #{tpu_custom_call.1} parent=5 // pred_region
        %s287 = ssub.s32 %s25, 1
        %s288 = sand.u32 %s52, 1
        %s289 = scalar_lea.sflag [#allocation3], %s288
        %s290 = sand.u32 %s52, 1
        %s291 = smul.addr %s290, 8
        %s292 = scalar_lea.vmem [#allocation2], %s291
        // Predicated region
        $region37: #{tpu_custom_call.1} parent=35 // pred_check
          %p293 = pneg %p65
        $region38: #{tpu_custom_call.1} parent=35 // pred_check_branch
          %295 = sbr.rel (%p293) target = $region40
        $region39: #{tpu_custom_call.1} parent=35 // pred_region
          %296 = dma.done %s289, 128
        $region40: #{tpu_custom_call.1} parent=35 // pred_fallthru
          _
        %s297 = sand.u32 %s30, 1
        %s298 = scalar_lea.sflag [#allocation6], %s297
        %s299 = sand.u32 %s78, 1
        %s300 = smul.addr %s299, 8
        %s301 = scalar_lea.vmem [#allocation5], %s300
        // Predicated region
        $region41: #{tpu_custom_call.1} parent=35 // pred_check
          %p302 = pneg %p91
        $region42: #{tpu_custom_call.1} parent=35 // pred_check_branch
          %304 = sbr.rel (%p302) target = $region44
        $region43: #{tpu_custom_call.1} parent=35 // pred_region
          %305 = dma.done %s298, 128
        $region44: #{tpu_custom_call.1} parent=35 // pred_fallthru
          _
        %s306 = sand.u32 %s30, 1
        %s307 = scalar_lea.sflag [#allocation6], %s306
        %s308 = sand.u32 %s104, 1
        %s309 = smul.addr %s308, 8
        %s310 = scalar_lea.vmem [#allocation7], %s309
        // Predicated region
        $region45: #{tpu_custom_call.1} parent=35 // pred_check
          %p311 = pneg %p117
        $region46: #{tpu_custom_call.1} parent=35 // pred_check_branch
          %313 = sbr.rel (%p311) target = $region48
        $region47: #{tpu_custom_call.1} parent=35 // pred_region
          %314 = dma.done %s307, 128
        $region48: #{tpu_custom_call.1} parent=35 // pred_fallthru
          _
        // Predicated region
        $region49: #{tpu_custom_call.1} parent=35 // pred_check
          %p315 = pneg %p138
        $region50: #{tpu_custom_call.1} parent=35 // pred_check_branch
          %317 = sbr.rel (%p315) target = $region52
        $region51: #{tpu_custom_call.1} parent=35 // pred_region
          %318 = dma.done [#allocation9], 1024
        $region52: #{tpu_custom_call.1} parent=35 // pred_fallthru
          _
        %s319 = sand.u32 %s52, 1
        %s320 = scalar_lea.sflag [#allocation3], %s319
        %s321 = sand.u32 %s52, 1
        %s322 = smul.addr %s321, 8
        %s323 = scalar_lea.vmem [#allocation2], %s322
        %p324 = pneg %p65
        %p325 = pneg %p62
        %s326 = sand.u32 %s30, 1
        %s327 = scalar_lea.sflag [#allocation6], %s326
        %s328 = sand.u32 %s78, 1
        %s329 = smul.addr %s328, 8
        %s330 = scalar_lea.vmem [#allocation5], %s329
        %p331 = pneg %p91
        %p332 = pneg %p88
        %s333 = sand.u32 %s30, 1
        %s334 = scalar_lea.sflag [#allocation6], %s333
        %s335 = sand.u32 %s104, 1
        %s336 = smul.addr %s335, 8
        %s337 = scalar_lea.vmem [#allocation7], %s336
        %p338 = pneg %p117
        %p339 = pneg %p114
        %p340 = pneg %p138
        %p341 = pneg %p135
        %p342 = pneg %p166
        %p343 = pneg %p163
        %s344 = sand.u32 %s153, 1
        %s345 = scalar_lea.sflag [#allocation4], %s344
        %s346 = sand.u32 %s153, 1
        %s347 = smul.addr %s346, 8
        %s348 = scalar_lea.vmem [#allocation10], %s347
        %p349 = pneg %p194
        %p350 = pneg %p191
        %s351 = sand.u32 %s181, 1
        %s352 = scalar_lea.sflag [#allocation12], %s351
        %s353 = sand.u32 %s181, 1
        %s354 = smul.addr %s353, 8
        %s355 = scalar_lea.vmem [#allocation11], %s354
        %v356 = vld [vmem:[%s292] sm:$0xff]
        %v357 = vld [vmem:[%s301] sm:$0xff]
        %v358 = vld [vmem:[%s310] sm:$0xff]
        %v359 = vld [vmem:[#allocation8] sm:$0xff]
        %v360 = vld [vmem:[#allocation8 + $0x8] sm:$0xff]
        %v361 = vld [vmem:[#allocation8 + $0x10] sm:$0xff]
        %v362 = vld [vmem:[#allocation8 + $0x18] sm:$0xff]
        %v363 = vld [vmem:[#allocation8 + $0x20] sm:$0xff]
        %v364 = vld [vmem:[#allocation8 + $0x28] sm:$0xff]
        %v365 = vld [vmem:[#allocation8 + $0x30] sm:$0xff]
        %v366 = vld [vmem:[#allocation8 + $0x38] sm:$0xff]
        %vm367 = vcmask 261120
        %v369 = vsel %vm367, %v356, 0
        %371 = vmatprep.subr.mxu0 %v360
        %372 = vmatpush1.msra.mxu0 %v359
        %373 = vmatprep.subr.mxu0 %v362
        %374 = vmatpush1.msra.mxu0 %v361
        %375 = vmatprep.subr.mxu0 %v364
        %376 = vmatpush1.msra.mxu0 %v363
        %377 = vmatprep.subr.mxu0 %v366
        %378 = vmatpush1.msra.mxu0 %v365
        %379 = vmatprep.subr.mxu0 0.0
        %380 = vmatpush1.msra.mxu0 0.0
        %381 = vmatprep.subr.mxu0 0.0
        %382 = vmatpush1.msra.mxu0 0.0
        %383 = vmatprep.subr.mxu0 0.0
        %384 = vmatpush1.msra.mxu0 0.0
        %385 = vmatprep.subr.mxu0 0.0
        %386 = vmatpush1.msra.mxu0 0.0
        %387 = vmatprep.subr.mxu0 0.0
        %388 = vmatpush1.msra.mxu0 0.0
        %389 = vmatprep.subr.mxu0 0.0
        %390 = vmatpush1.msra.mxu0 0.0
        %391 = vmatprep.subr.mxu0 0.0
        %392 = vmatpush1.msra.mxu0 0.0
        %393 = vmatprep.subr.mxu0 0.0
        %394 = vmatpush1.msra.mxu0 0.0
        %395 = vmatprep.subr.mxu0 0.0
        %396 = vmatpush1.msra.mxu0 0.0
        %397 = vmatprep.subr.mxu0 0.0
        %398 = vmatpush1.msra.mxu0 0.0
        %399 = vmatprep.subr.mxu0 0.0
        %400 = vmatpush1.msra.mxu0 0.0
        %401 = vmatprep.subr.mxu0 0.0
        %402 = vmatpush1.msra.mxu0 0.0
        %403 = vmatprep.subr.mxu0 0.0
        %404 = vmatpush1.msra.mxu0 0.0
        %405 = vmatprep.subr.mxu0 0.0
        %406 = vmatpush1.msra.mxu0 0.0
        %407 = vmatprep.subr.mxu0 0.0
        %408 = vmatpush1.msra.mxu0 0.0
        %409 = vmatprep.subr.mxu0 0.0
        %410 = vmatpush1.msra.mxu0 0.0
        %411 = vmatprep.subr.mxu0 0.0
        %412 = vmatpush1.msra.mxu0 0.0
        %413 = vmatprep.subr.mxu0 0.0
        %414 = vmatpush1.msra.mxu0 0.0
        %415 = vmatprep.subr.mxu0 0.0
        %416 = vmatpush1.msra.mxu0 0.0
        %417 = vmatprep.subr.mxu0 0.0
        %418 = vmatpush1.msra.mxu0 0.0
        %419 = vmatprep.subr.mxu0 0.0
        %420 = vmatpush1.msra.mxu0 0.0
        %421 = vmatprep.subr.mxu0 0.0
        %422 = vmatpush1.msra.mxu0 0.0
        %423 = vmatprep.subr.mxu0 0.0
        %424 = vmatpush1.msra.mxu0 0.0
        %425 = vmatprep.subr.mxu0 0.0
        %426 = vmatpush1.msra.mxu0 0.0
        %427 = vmatprep.subr.mxu0 0.0
        %428 = vmatpush1.msra.mxu0 0.0
        %429 = vmatprep.subr.mxu0 0.0
        %430 = vmatpush1.msra.mxu0 0.0
        %431 = vmatprep.subr.mxu0 0.0
        %432 = vmatpush1.msra.mxu0 0.0
        %433 = vmatprep.subr.mxu0 0.0
        %434 = vmatpush1.msra.mxu0 0.0
        %435 = vmatprep.mubr.f32.mxu0 0.0
        %436 = vmatmul.mubr.f32.gmra.mrb[0].mxu0 %v369
        %v437 = vpop.f32.mrb[0].mxu0
        %v438 = vadd.f32 0.0, %v437
        %v439 = vpop.f32.mrb[0].mxu0
        %440 = vdwg.mxu0
        %442 = vset.pattern.permute.xlu0 32
        %443 = vperm.xlu0 %442, %v438
        %v444 = vpop.permute.xlu0 %443
        %v446 = vsel %vm367, %v438, 0
        %v449 = vsel %vm367, %v357, 0
        %451 = vmatprep.subr.mxu0 0.0
        %452 = vmatpush1.xpose.msra.mxu0 %v449
        %453 = vmatprep.subr.mxu0 0.0
        %454 = vmatpush1.xpose.msra.mxu0 0.0
        %455 = vmatprep.subr.mxu0 0.0
        %456 = vmatpush1.xpose.msra.mxu0 0.0
        %457 = vmatprep.subr.mxu0 0.0
        %458 = vmatpush1.xpose.msra.mxu0 0.0
        %459 = vmatprep.subr.mxu0 0.0
        %460 = vmatpush1.xpose.msra.mxu0 0.0
        %461 = vmatprep.subr.mxu0 0.0
        %462 = vmatpush1.xpose.msra.mxu0 0.0
        %463 = vmatprep.subr.mxu0 0.0
        %464 = vmatpush1.xpose.msra.mxu0 0.0
        %465 = vmatprep.subr.mxu0 0.0
        %466 = vmatpush1.xpose.msra.mxu0 0.0
        %467 = vmatprep.subr.mxu0 0.0
        %468 = vmatpush1.xpose.msra.mxu0 0.0
        %469 = vmatprep.subr.mxu0 0.0
        %470 = vmatpush1.xpose.msra.mxu0 0.0
        %471 = vmatprep.subr.mxu0 0.0
        %472 = vmatpush1.xpose.msra.mxu0 0.0
        %473 = vmatprep.subr.mxu0 0.0
        %474 = vmatpush1.xpose.msra.mxu0 0.0
        %475 = vmatprep.subr.mxu0 0.0
        %476 = vmatpush1.xpose.msra.mxu0 0.0
        %477 = vmatprep.subr.mxu0 0.0
        %478 = vmatpush1.xpose.msra.mxu0 0.0
        %479 = vmatprep.subr.mxu0 0.0
        %480 = vmatpush1.xpose.msra.mxu0 0.0
        %481 = vmatprep.subr.mxu0 0.0
        %482 = vmatpush1.xpose.msra.mxu0 0.0
        %483 = vmatprep.subr.mxu0 0.0
        %484 = vmatpush1.xpose.msra.mxu0 0.0
        %485 = vmatprep.subr.mxu0 0.0
        %486 = vmatpush1.xpose.msra.mxu0 0.0
        %487 = vmatprep.subr.mxu0 0.0
        %488 = vmatpush1.xpose.msra.mxu0 0.0
        %489 = vmatprep.subr.mxu0 0.0
        %490 = vmatpush1.xpose.msra.mxu0 0.0
        %491 = vmatprep.subr.mxu0 0.0
        %492 = vmatpush1.xpose.msra.mxu0 0.0
        %493 = vmatprep.subr.mxu0 0.0
        %494 = vmatpush1.xpose.msra.mxu0 0.0
        %495 = vmatprep.subr.mxu0 0.0
        %496 = vmatpush1.xpose.msra.mxu0 0.0
        %497 = vmatprep.subr.mxu0 0.0
        %498 = vmatpush1.xpose.msra.mxu0 0.0
        %499 = vmatprep.subr.mxu0 0.0
        %500 = vmatpush1.xpose.msra.mxu0 0.0
        %501 = vmatprep.subr.mxu0 0.0
        %502 = vmatpush1.xpose.msra.mxu0 0.0
        %503 = vmatprep.subr.mxu0 0.0
        %504 = vmatpush1.xpose.msra.mxu0 0.0
        %505 = vmatprep.subr.mxu0 0.0
        %506 = vmatpush1.xpose.msra.mxu0 0.0
        %507 = vmatprep.subr.mxu0 0.0
        %508 = vmatpush1.xpose.msra.mxu0 0.0
        %509 = vmatprep.subr.mxu0 0.0
        %510 = vmatpush1.xpose.msra.mxu0 0.0
        %511 = vmatprep.subr.mxu0 0.0
        %512 = vmatpush1.xpose.msra.mxu0 0.0
        %513 = vmatprep.subr.mxu0 0.0
        %514 = vmatpush1.xpose.msra.mxu0 0.0
        %515 = vmatprep.mubr.f32.mxu0 0.0
        %516 = vmatmul.mubr.f32.gmra.mrb[0].mxu0 %v446
        %v517 = vpop.f32.mrb[0].mxu0
        %v518 = vadd.f32 %v444, %v517
        %v519 = vpop.f32.mrb[0].mxu0
        %520 = vdwg.mxu0
        %vm521 = vcmask 64512
        %v522 = vsel %vm521, %v518, -inf
        %523 = vmax.xlane.f32.xlu0 %v522
        %v524 = vpop.xlane.xlu0 %523
        %v525 = vsub.f32 %v518, %v524
        %v526 = vmul.f32 %v525, 1.442695
        %v527 = vpow.pop %v526
        %v528 = vsel %vm521, %v527, 0.0
        %529 = vadd.xlane.f32.xlu0 %v528
        %v530 = vpop.xlane.xlu0 %529
        %v531 = vrcp.pop %v530
        %v532 = vmul.f32 %v530, %v531
        %v533 = vsub.f32 2.0, %v532
        %v534 = vmul.f32 %v531, %v533
        %v535 = vmul.f32 %v527, %v534
        %v537 = vsel %vm521, %v535, 0
        %539 = vmatprep.subr.mxu0 0.0
        %540 = vmatpush1.msra.mxu0 %v358
        %541 = vmatprep.subr.mxu0 0.0
        %542 = vmatpush1.msra.mxu0 0.0
        %543 = vmatprep.subr.mxu0 0.0
        %544 = vmatpush1.msra.mxu0 0.0
        %545 = vmatprep.subr.mxu0 0.0
        %546 = vmatpush1.msra.mxu0 0.0
        %547 = vmatprep.subr.mxu0 0.0
        %548 = vmatpush1.msra.mxu0 0.0
        %549 = vmatprep.subr.mxu0 0.0
        %550 = vmatpush1.msra.mxu0 0.0
        %551 = vmatprep.subr.mxu0 0.0
        %552 = vmatpush1.msra.mxu0 0.0
        %553 = vmatprep.subr.mxu0 0.0
        %554 = vmatpush1.msra.mxu0 0.0
        %555 = vmatprep.subr.mxu0 0.0
        %556 = vmatpush1.msra.mxu0 0.0
        %557 = vmatprep.subr.mxu0 0.0
        %558 = vmatpush1.msra.mxu0 0.0
        %559 = vmatprep.subr.mxu0 0.0
        %560 = vmatpush1.msra.mxu0 0.0
        %561 = vmatprep.subr.mxu0 0.0
        %562 = vmatpush1.msra.mxu0 0.0
        %563 = vmatprep.subr.mxu0 0.0
        %564 = vmatpush1.msra.mxu0 0.0
        %565 = vmatprep.subr.mxu0 0.0
        %566 = vmatpush1.msra.mxu0 0.0
        %567 = vmatprep.subr.mxu0 0.0
        %568 = vmatpush1.msra.mxu0 0.0
        %569 = vmatprep.subr.mxu0 0.0
        %570 = vmatpush1.msra.mxu0 0.0
        %571 = vmatprep.subr.mxu0 0.0
        %572 = vmatpush1.msra.mxu0 0.0
        %573 = vmatprep.subr.mxu0 0.0
        %574 = vmatpush1.msra.mxu0 0.0
        %575 = vmatprep.subr.mxu0 0.0
        %576 = vmatpush1.msra.mxu0 0.0
        %577 = vmatprep.subr.mxu0 0.0
        %578 = vmatpush1.msra.mxu0 0.0
        %579 = vmatprep.subr.mxu0 0.0
        %580 = vmatpush1.msra.mxu0 0.0
        %581 = vmatprep.subr.mxu0 0.0
        %582 = vmatpush1.msra.mxu0 0.0
        %583 = vmatprep.subr.mxu0 0.0
        %584 = vmatpush1.msra.mxu0 0.0
        %585 = vmatprep.subr.mxu0 0.0
        %586 = vmatpush1.msra.mxu0 0.0
        %587 = vmatprep.subr.mxu0 0.0
        %588 = vmatpush1.msra.mxu0 0.0
        %589 = vmatprep.subr.mxu0 0.0
        %590 = vmatpush1.msra.mxu0 0.0
        %591 = vmatprep.subr.mxu0 0.0
        %592 = vmatpush1.msra.mxu0 0.0
        %593 = vmatprep.subr.mxu0 0.0
        %594 = vmatpush1.msra.mxu0 0.0
        %595 = vmatprep.subr.mxu0 0.0
        %596 = vmatpush1.msra.mxu0 0.0
        %597 = vmatprep.subr.mxu0 0.0
        %598 = vmatpush1.msra.mxu0 0.0
        %599 = vmatprep.subr.mxu0 0.0
        %600 = vmatpush1.msra.mxu0 0.0
        %601 = vmatprep.subr.mxu0 0.0
        %602 = vmatpush1.msra.mxu0 0.0
        %603 = vmatprep.mubr.f32.mxu0 0.0
        %604 = vmatmul.mubr.f32.gmra.mrb[0].mxu0 %v537
        %v605 = vpop.f32.mrb[0].mxu0
        %v606 = vadd.f32 0.0, %v605
        %v607 = vpop.f32.mrb[0].mxu0
        %608 = vdwg.mxu0
        %609 = vst.msk [vmem:[%s355] sm:$0xff] %vm521, %v535
        %610 = vst.msk [vmem:[%s348] sm:$0xff] %vm367, %v606
        %s611 = sand.u32 %s153, 1
        %s612 = scalar_lea.sflag [#allocation4], %s611
        %s613 = sand.u32 %s153, 1
        %s614 = smul.addr %s613, 8
        %s615 = scalar_lea.vmem [#allocation10], %s614
        %s616 = sand.u32 %s181, 1
        %s617 = scalar_lea.sflag [#allocation12], %s616
        %s618 = sand.u32 %s181, 1
        %s619 = smul.addr %s618, 8
        %s620 = scalar_lea.vmem [#allocation11], %s619
        // Predicated region
        $region53: #{tpu_custom_call.1} parent=35 // pred_check
          %p621 = pneg %p163
        $region54: #{tpu_custom_call.1} parent=35 // pred_check_branch
          %623 = sbr.rel (%p621) target = $region56
        $region55: #{tpu_custom_call.1} parent=35 // pred_region
          %s625 = ssub.s32 128, 128
          %626 = vsyncadd %s612, %s625
          %s627 = sadd.s32 %s35, %s34
          %s628 = smul.addr %s627, 128
          %s629 = scalar_lea.hbm %s4, %s628
          %s631 = sshll.u32 %s615, 4
          %s632 = int_to_ptr.vmem [resolvable:$true] %s631
          %634 = dma.vmem_to_hbm [thread:$0]  %s632, 128, %s629, %s612
        $region56: #{tpu_custom_call.1} parent=35 // pred_fallthru
          _
        // Predicated region
        $region57: #{tpu_custom_call.1} parent=35 // pred_check
          %p635 = pneg %p191
        $region58: #{tpu_custom_call.1} parent=35 // pred_check_branch
          %637 = sbr.rel (%p635) target = $region60
        $region59: #{tpu_custom_call.1} parent=35 // pred_region
          %s639 = ssub.s32 128, 128
          %640 = vsyncadd %s617, %s639
          %s641 = sadd.s32 %s35, %s34
          %s642 = smul.addr %s641, 128
          %s643 = scalar_lea.hbm %s5, %s642
          %s645 = sshll.u32 %s620, 4
          %s646 = int_to_ptr.vmem [resolvable:$true] %s645
          %648 = dma.vmem_to_hbm [thread:$0]  %s646, 128, %s643, %s617
        $region60: #{tpu_custom_call.1} parent=35 // pred_fallthru
          _
      $region36: #{tpu_custom_call.1} parent=5 // pred_fallthru
        _
      %p649 = scmp.le.s32.totalorder 2, %s25
      // Predicated region
      $region61: #{tpu_custom_call.1} parent=5 // pred_check
        %p650 = pneg %p649
      $region62: #{tpu_custom_call.1} parent=5 // pred_check_branch
        %652 = sbr.rel (%p650) target = $region64
      $region63: #{tpu_custom_call.1} parent=5 // pred_region
        %s653 = ssub.s32 %s25, 2
        // Predicated region
        $region65: #{tpu_custom_call.1} parent=63 // pred_check
          %p654 = pneg %p169
        $region66: #{tpu_custom_call.1} parent=63 // pred_check_branch
          %656 = sbr.rel (%p654) target = $region68
        $region67: #{tpu_custom_call.1} parent=63 // pred_region
          %s657 = sand.u32 %s154, 1
          %s658 = scalar_lea.sflag [#allocation4], %s657
          %s659 = sand.u32 %s154, 1
          %s660 = smul.addr %s659, 8
          %s661 = scalar_lea.vmem [#allocation10], %s660
          %662 = dma.done %s658, 128
        $region68: #{tpu_custom_call.1} parent=63 // pred_fallthru
          _
        // Predicated region
        $region69: #{tpu_custom_call.1} parent=63 // pred_check
          %p663 = pneg %p197
        $region70: #{tpu_custom_call.1} parent=63 // pred_check_branch
          %665 = sbr.rel (%p663) target = $region72
        $region71: #{tpu_custom_call.1} parent=63 // pred_region
          %s666 = sand.u32 %s182, 1
          %s667 = scalar_lea.sflag [#allocation12], %s666
          %s668 = sand.u32 %s182, 1
          %s669 = smul.addr %s668, 8
          %s670 = scalar_lea.vmem [#allocation11], %s669
          %671 = dma.done %s667, 128
        $region72: #{tpu_custom_call.1} parent=63 // pred_fallthru
          _
      $region64: #{tpu_custom_call.1} parent=5 // pred_fallthru
        _
    $region6: #{tpu_custom_call.1} parent=1 // loop_footer
      %s29 = sadd.s32 1, %s25
    $region7: #{tpu_custom_call.1} parent=1 // loop_footer_branch
      %24 = sbr.rel target = $region3
    $region8: #{tpu_custom_call.1} parent=1 // loop_exit
      _
    %672 = vsyncpa [#allocation3], 1
    %s673 = scalar_lea.sflag [#allocation3], 1
    %674 = vsyncpa %s673, 1
    %675 = vsyncpa [#allocation6], 1
    %s676 = scalar_lea.sflag [#allocation6], 1
    %677 = vsyncpa %s676, 1
    %678 = vsyncpa [#allocation9], 1
    %679 = vsyncpa [#allocation4], 1
    %s680 = scalar_lea.sflag [#allocation4], 1
    %681 = vsyncpa %s680, 1
    %682 = vsyncpa [#allocation12], 1
    %s683 = scalar_lea.sflag [#allocation12], 1
    %684 = vsyncpa %s683, 1

</llo_original>
